<compile_context>
chip_gen: v7x
topology: tpu7x:2x2x1
jax: 0.10.0
libtpu: 0.0.40
codegen_flags: <defaults>
</compile_context>

<pallas_src>
import jax
import jax.numpy as jnp
from jax import lax
from jax.experimental import pallas as pl
from jax.experimental.pallas import tpu as pltpu

EPS = 1e-10
LANE = 128


def _min_sublane(dtype):
    """Minimum second-minor block multiple for a dtype (sublane packing)."""
    itemsize = jnp.dtype(dtype).itemsize
    return max(8, 8 * (4 // max(1, itemsize)))  # f32->8, bf16->16, int8/bool->32


def _make_kernel(scale, rows_valid, bs, acc_rows, n_chunks, mask_last):
    scale = float(scale)

    def _partials(p_ref, t_ref, block_row0, masked):
        def body(c, carry):
            s_acc, c_acc = carry
            r0 = pl.multiple_of(c * acc_rows, acc_rows)
            # Native-dtype loads; cast to f32 BEFORE adding EPS (EPS underflows bf16).
            p = p_ref[pl.ds(r0, acc_rows), :].astype(jnp.float32)
            t = t_ref[pl.ds(r0, acc_rows), :].astype(jnp.float32)
            loss = (-scale) * t * jnp.log(p + EPS) - (1.0 - t) * jnp.log(1.0 - p + EPS)
            valid = jnp.logical_not(jnp.isnan(loss))
            if masked:  # only traced for the (possibly partial) last block
                row = lax.broadcasted_iota(jnp.int32, loss.shape, 0) + (block_row0 + r0)
                valid = valid & (row < rows_valid)
            # (acc_rows,128) -> (acc_rows//8, 8, 128): layout-free view; the axis-0
            # sums are pure VPU slab adds (no XLU cross-lane work).
            loss_c = jnp.where(valid, loss, 0.0).reshape(acc_rows // 8, 8, LANE)
            cnt_c = valid.astype(jnp.float32).reshape(acc_rows // 8, 8, LANE)
            s_acc = s_acc + jnp.sum(loss_c, axis=0)
            c_acc = c_acc + jnp.sum(cnt_c, axis=0)
            return s_acc, c_acc

        zero = jnp.zeros((8, LANE), jnp.float32)
        return lax.fori_loop(0, n_chunks, body, (zero, zero), unroll=True)

    def kernel(p_ref, t_ref, out_ref):
        i = pl.program_id(0)
        block_row0 = i * bs

        if mask_last:
            last = pl.num_programs(0) - 1

            @pl.when(i != last)
            def _():
                s, c = _partials(p_ref, t_ref, block_row0, masked=False)
                out_ref[0] = s
                out_ref[1] = c

            @pl.when(i == last)
            def _():
                s, c = _partials(p_ref, t_ref, block_row0, masked=True)
                out_ref[0] = s
                out_ref[1] = c
        else:
            s, c = _partials(p_ref, t_ref, block_row0, masked=False)
            out_ref[0] = s
            out_ref[1] = c

    return kernel


def asymmetric_bce_loss(predict, target, scale=2.0, block_rows=2048):
    """JAX/Pallas equivalent of AsymmetricBCELoss(scale).forward(predict, target).

    block_rows=2048 -> 2048*128*4 B = 1 MiB per f32 input block (0.5 MiB bf16);
    2 inputs x 2 pipeline buffers = 4 MiB VMEM, safely under the default scoped
    limit on v5e (16 MiB), v6e (32 MiB) and v7x (32 of 64 MiB).  On v6e this can
    be raised to 4096-8192 for a small extra gain.
    """
    p_flat = predict.reshape(-1)
    t_flat = target.reshape(-1)
    n = int(p_flat.shape[0])

    pack = max(_min_sublane(p_flat.dtype), _min_sublane(t_flat.dtype))
    rows_total = n // LANE

    kernel_sum = jnp.float32(0.0)
    kernel_cnt = jnp.float32(0.0)
    main_elems = 0

    if rows_total >= pack:
        main_elems = rows_total * LANE
        # (rows, 128) lane-row view. Free when n % 128 == 0 (the common case);
        # otherwise the aligned prefix is sliced once (tail handled below).
        p2d = p_flat[:main_elems].reshape(rows_total, LANE)
        t2d = t_flat[:main_elems].reshape(rows_total, LANE)

        # Block-size heuristic: big blocks to amortize per-step overhead, but
        # keep >= ~8 grid steps so v7x can shard the parallel axis across TCs.
        bs = min(int(block_rows), rows_total)
        if rows_total // max(1, bs) < 8:
            bs = max(1, rows_total // 8)
        if bs >= 256:
            bs = (bs // 256) * 256
        else:
            bs = max(pack, (bs // pack) * pack)

        # Chunk rows: largest divisor of bs that is a multiple of `pack`, <= 256.
        acc_rows = pack
        d = pack
        lim = min(bs, 256)
        while d <= lim:
            if bs % d == 0:
                acc_rows = d
            d += pack
        n_chunks = bs // acc_rows

        g = pl.cdiv(rows_total, bs)
        mask_last = (rows_total % bs) != 0

        partials = pl.pallas_call(
            _make_kernel(scale, rows_total, bs, acc_rows, n_chunks, mask_last),
            out_shape=jax.ShapeDtypeStruct((g, 2, 8, LANE), jnp.float32),
            grid_spec=pltpu.PrefetchScalarGridSpec(
                num_scalar_prefetch=0,
                grid=(g,),
                in_specs=[
                    pl.BlockSpec((bs, LANE), lambda i: (i, 0)),
                    pl.BlockSpec((bs, LANE), lambda i: (i, 0)),
                ],
                # One packed output block per step: [0]=partial sum, [1]=partial count.
                out_specs=pl.BlockSpec((None, 2, 8, LANE), lambda i: (i, 0, 0, 0)),
            ),
            compiler_params=pltpu.CompilerParams(
                dimension_semantics=("parallel",),
            ),
        )(p2d, t2d)

        kernel_sum = jnp.sum(partials[:, 0])
        kernel_cnt = jnp.sum(partials[:, 1])

    # Tail: < 128 elements when the kernel ran; everything for tiny inputs.
    scale_f = float(scale)
    pt = p_flat[main_elems:].astype(jnp.float32)
    tt = t_flat[main_elems:].astype(jnp.float32)
    tl = (-scale_f) * tt * jnp.log(pt + EPS) - (1.0 - tt) * jnp.log(1.0 - pt + EPS)
    tvalid = jnp.logical_not(jnp.isnan(tl))
    tail_sum = jnp.sum(jnp.where(tvalid, tl, 0.0))
    tail_cnt = jnp.sum(tvalid.astype(jnp.float32))

    total_sum = kernel_sum + tail_sum
    total_cnt = kernel_cnt + tail_cnt
    # 0/0 -> NaN matches torch.nanmean for empty / all-NaN loss.
    return total_sum / total_cnt


def _reference(predict, target, scale=2.0):
    p = predict.reshape(-1).astype(jnp.float32)
    t = target.reshape(-1).astype(jnp.float32)
    loss = -scale * t * jnp.log(p + EPS) - (1.0 - t) * jnp.log(1.0 - p + EPS)
    return jnp.nanmean(loss)


if __name__ == "__main__":
    key = jax.random.PRNGKey(0)
    k1, k2, k3, k4 = jax.random.split(key, 4)

    # Test 1: aligned NCHW-like shape, probabilities in (0, 1), binary targets.
    shape = (2, 4, 16, 16)
    predict = jax.random.uniform(
        k1, shape, dtype=jnp.float32, minval=1e-4, maxval=1.0 - 1e-4
    )
    target = (jax.random.uniform(k2, shape, dtype=jnp.float32) > 0.5).astype(jnp.float32)

    loss = asymmetric_bce_loss(predict, target, scale=2.0)
    loss = jax.block_until_ready(loss)
    ref = _reference(predict, target, scale=2.0)
    assert jnp.allclose(loss, ref, rtol=1e-5, atol=1e-6), (loss, ref)

    # Test 2: unaligned size (exercises the masked last block + lane tail) and
    # a NaN-producing element (exercises nanmean exclusion).
    shape2 = (3, 5, 7, 11)
    predict2 = jax.random.uniform(
        k3, shape2, dtype=jnp.float32, minval=1e-4, maxval=1.0 - 1e-4
    )
    predict2 = predict2.at[0, 0, 0, 0].set(-0.5)  # log of negative -> NaN loss
    target2 = (jax.random.uniform(k4, shape2, dtype=jnp.float32) > 0.5).astype(jnp.float32)

    loss2 = asymmetric_bce_loss(predict2, target2, scale=2.0)
    loss2 = jax.block_until_ready(loss2)
    ref2 = _reference(predict2, target2, scale=2.0)
    assert jnp.allclose(loss2, ref2, rtol=1e-5, atol=1e-6), (loss2, ref2)

    print("KERNEL_OK")
</pallas_src>

<mosaic_0001>
module attributes {stable_mosaic.version = 11 : i64} {
  func.func @kernel(%arg0: i32, %arg1: memref<8x128xf32, #tpu.memory_space<vmem>>, %arg2: memref<8x128xf32, #tpu.memory_space<vmem>>, %arg3: memref<1x2x8x128xf32, #tpu.memory_space<vmem>>) attributes {dimension_semantics = [#tpu.dimension_semantics<parallel>], iteration_bounds = array<i64: 2>, scalar_prefetch = 0 : i64, scratch_operands = 0 : i64, tpu.core_type = #tpu.core_type<tc>, window_params = [{transform_indices = @transform_0, window_bounds = array<i64: 8, 128>}, {transform_indices = @transform_1, window_bounds = array<i64: 8, 128>}, {transform_indices = @transform_2, window_bounds = array<i64: 1, 2, 8, 128>}]} {
    %cst = arith.constant 0.000000e+00 : f32
    %0 = vector.broadcast %cst : f32 to vector<8x128xf32>
    %c0_i32 = arith.constant 0 : i32
    %c8_i32 = arith.constant 8 : i32
    %1 = arith.muli %c0_i32, %c8_i32 : i32
    %2 = tpu.assume_multiple %1, 8 : i32
    %3 = arith.index_cast %2 : i32 to index
    %c0 = arith.constant 0 : index
    %4 = vector.load %arg1[%3, %c0] : memref<8x128xf32, #tpu.memory_space<vmem>>, vector<8x128xf32>
    %5 = arith.index_cast %2 : i32 to index
    %c0_0 = arith.constant 0 : index
    %6 = vector.load %arg2[%5, %c0_0] : memref<8x128xf32, #tpu.memory_space<vmem>>, vector<8x128xf32>
    %cst_1 = arith.constant -2.000000e+00 : f32
    %7 = vector.broadcast %cst_1 : f32 to vector<8x128xf32>
    %8 = arith.mulf %7, %6 : vector<8x128xf32>
    %cst_2 = arith.constant 1.000000e-10 : f32
    %9 = vector.broadcast %cst_2 : f32 to vector<8x128xf32>
    %10 = arith.addf %4, %9 : vector<8x128xf32>
    %11 = math.log %10 : vector<8x128xf32>
    %12 = arith.mulf %8, %11 : vector<8x128xf32>
    %cst_3 = arith.constant 1.000000e+00 : f32
    %13 = vector.broadcast %cst_3 : f32 to vector<8x128xf32>
    %14 = arith.subf %13, %6 : vector<8x128xf32>
    %cst_4 = arith.constant 1.000000e+00 : f32
    %15 = vector.broadcast %cst_4 : f32 to vector<8x128xf32>
    %16 = arith.subf %15, %4 : vector<8x128xf32>
    %cst_5 = arith.constant 1.000000e-10 : f32
    %17 = vector.broadcast %cst_5 : f32 to vector<8x128xf32>
    %18 = arith.addf %16, %17 : vector<8x128xf32>
    %19 = math.log %18 : vector<8x128xf32>
    %20 = arith.mulf %14, %19 : vector<8x128xf32>
    %21 = arith.subf %12, %20 : vector<8x128xf32>
    %22 = arith.cmpf one, %21, %21 : vector<8x128xf32>
    %cst_6 = arith.constant dense<true> : vector<8x128xi1>
    %23 = arith.xori %22, %cst_6 : vector<8x128xi1>
    %cst_7 = arith.constant 0.000000e+00 : f32
    %24 = vector.broadcast %cst_7 : f32 to vector<8x128xf32>
    %25 = arith.select %23, %21, %24 : vector<8x128xi1>, vector<8x128xf32>
    %26 = vector.shape_cast %25 : vector<8x128xf32> to vector<1x8x128xf32>
    %27 = arith.extui %23 : vector<8x128xi1> to vector<8x128xi32>
    %28 = arith.sitofp %27 : vector<8x128xi32> to vector<8x128xf32>
    %29 = vector.shape_cast %28 : vector<8x128xf32> to vector<1x8x128xf32>
    %cst_8 = arith.constant dense<0.000000e+00> : vector<8x128xf32>
    %30 = vector.multi_reduction <add>, %26, %cst_8 [0] : vector<1x8x128xf32> to vector<8x128xf32>
    %31 = arith.addf %0, %30 : vector<8x128xf32>
    %cst_9 = arith.constant dense<0.000000e+00> : vector<8x128xf32>
    %32 = vector.multi_reduction <add>, %29, %cst_9 [0] : vector<1x8x128xf32> to vector<8x128xf32>
    %33 = arith.addf %0, %32 : vector<8x128xf32>
    %c1_i32 = arith.constant 1 : i32
    %c0_10 = arith.constant 0 : index
    %c0_11 = arith.constant 0 : index
    %c0_12 = arith.constant 0 : index
    %c0_13 = arith.constant 0 : index
    %34 = vector.load %arg3[%c0_10, %c0_11, %c0_12, %c0_13] : memref<1x2x8x128xf32, #tpu.memory_space<vmem>>, vector<1x1x8x128xf32>
    %35 = vector.shape_cast %34 : vector<1x1x8x128xf32> to vector<8x128xf32>
    %36 = vector.shape_cast %31 : vector<8x128xf32> to vector<1x1x8x128xf32>
    tpu.vector_store %arg3[%c0_10, %c0_11, %c0_12, %c0_13], %36 {strides = array<i32>} : memref<1x2x8x128xf32, #tpu.memory_space<vmem>>, vector<1x1x8x128xf32>,
    %c0_14 = arith.constant 0 : index
    %c1 = arith.constant 1 : index
    %c0_15 = arith.constant 0 : index
    %c0_16 = arith.constant 0 : index
    %37 = vector.load %arg3[%c0_14, %c1, %c0_15, %c0_16] : memref<1x2x8x128xf32, #tpu.memory_space<vmem>>, vector<1x1x8x128xf32>
    %38 = vector.shape_cast %37 : vector<1x1x8x128xf32> to vector<8x128xf32>
    %39 = vector.shape_cast %33 : vector<8x128xf32> to vector<1x1x8x128xf32>
    tpu.vector_store %arg3[%c0_14, %c1, %c0_15, %c0_16], %39 {strides = array<i32>} : memref<1x2x8x128xf32, #tpu.memory_space<vmem>>, vector<1x1x8x128xf32>,
    return
  }
  func.func @transform_0(%arg0: i32) -> (i32, i32) {
    %c0_i32 = arith.constant 0 : i32
    %c0_i32_0 = arith.constant 0 : i32
    return %arg0, %c0_i32 : i32, i32
  }
  func.func @transform_1(%arg0: i32) -> (i32, i32) {
    %c0_i32 = arith.constant 0 : i32
    %c0_i32_0 = arith.constant 0 : i32
    return %arg0, %c0_i32 : i32, i32
  }
  func.func @transform_2(%arg0: i32) -> (i32, i32, i32, i32) {
    %c0_i32 = arith.constant 0 : i32
    %c0_i32_0 = arith.constant 0 : i32
    %c0_i32_1 = arith.constant 0 : i32
    %c0_i32_2 = arith.constant 0 : i32
    return %arg0, %c0_i32, %c0_i32_0, %c0_i32_1 : i32, i32, i32, i32
  }
}

</mosaic_0001>

<llo_original>
// kernel: tpu_custom_call.1
$region0: #{tpu_custom_call.1}
  #allocation0 [shape = 'u32[]', space=smem, size = 0x4, offset = 0x4, fixed_abs, tag = 'smem constant byte address 0x4 - core index']
  #allocation1 [shape = 'u32[144,128]{1,0:T(1,128)}', space=vmem, size = 0x12000, scoped, tag = 'internal scratch']
  %s0 = inlined_call_operand.hbm [shape: f32[16,128], index: 0, kind: input, shape index: {}]
  %s1 = inlined_call_operand.hbm [shape: f32[16,128], index: 1, kind: input, shape index: {}]
  %s2 = inlined_call_operand.hbm [shape: f32[2,2,8,128], index: 2, kind: output, shape index: {}]
  %s3 = sld [smem:[#allocation0]]
  $region49: #{tpu_custom_call.1} parent=0
    _
  %s5 = ssub.s32 1, %s3
  %s6 = scalar_select 0, %s5, %s3
  $region1: #{tpu_custom_call.1} parent=0
    #allocation2 [shape = 'u8[8192]{0}', space=vmem, size = 0x2000, scoped, tag = 'input window, operand 0']
    #allocation3 [shape = 's32[2]{0}', space=sflag, size = 0x8, scoped, tag = 'scoped memory for tpu_custom_call.1']
    #allocation4 [shape = 's32[2]{0}', space=sflag, size = 0x8, scoped, tag = 'scoped memory for tpu_custom_call.1']
    #allocation5 [shape = 'u8[8192]{0}', space=vmem, size = 0x2000, scoped, tag = 'input window, operand 1']
    #allocation6 [shape = 's32[2]{0}', space=sflag, size = 0x8, scoped, tag = 'scoped memory for tpu_custom_call.1']
    #allocation7 [shape = 'u8[16384]{0}', space=vmem, size = 0x4000, scoped, tag = 'output window, operand 0']
    %7 = vsyncpa [#allocation3], 0
    %s8 = scalar_lea.sflag [#allocation3], 1
    %9 = vsyncpa %s8, 0
    %10 = vsyncpa [#allocation6], 0
    %s11 = scalar_lea.sflag [#allocation6], 1
    %12 = vsyncpa %s11, 0
    %13 = vsyncpa [#allocation4], 0
    %s14 = scalar_lea.sflag [#allocation4], 1
    %15 = vsyncpa %s14, 0
    loop: start=0, step=1, limit=4
    $region2: #{tpu_custom_call.1} parent=1 // loop_pre_header
      _
    $region3: #{tpu_custom_call.1} parent=1 // loop_header
      %s17 = sphi 0, %s21
      %p18 = scmp.ge.s32.totalorder %s17, 4
      %s27 = sphi 0, %s29
      %s30 = sphi 0, %s27
      %s31 = sphi 0, %s30
      %s47 = sphi 0, %s31
      %s53 = sphi 0, %s55
      %s56 = sphi 0, %s53
      %s57 = sphi 0, %s56
      %s73 = sphi 0, %s57
      %s79 = sphi 0, %s81
      %s82 = sphi 0, %s79
      %s83 = sphi 0, %s82
      %s99 = sphi 0, %s83
    $region4: #{tpu_custom_call.1} parent=1 // loop_header_branch
      %20 = sbr.rel (%p18) target = $region8
    $region5: #{tpu_custom_call.1} parent=1 // loop_body
      %s22 = ssub.s32 %s17, 1
      %s23 = ssub.s32 %s17, 2
      %s24 = sadd.s32 %s17, 1
      %s25 = ssub.s32 %s17, %s24
      %p26 = scmp.eq.s32.totalorder %s25, 0
      %s28 = sadd.s32 %s27, 1
      %s29 = scalar_select %p26, %s27, %s28
      %p32 = pneg %p26
      %p33 = scmp.eq.s32.totalorder %s17, 1
      %p34 = por %p32, %p33
      %p35 = scmp.ne.s32.totalorder %s27, %s30
      %p36 = scmp.eq.s32.totalorder %s17, 0
      %p37 = por %p35, %p36
      %p38 = scmp.ne.s32.totalorder %s27, %s30
      %p39 = scmp.eq.s32.totalorder %s22, 1
      %p40 = por %p38, %p39
      %p41 = scmp.ne.s32.totalorder %s30, %s31
      %p42 = scmp.eq.s32.totalorder %s22, 0
      %p43 = por %p41, %p42
      %p44 = scmp.ne.s32.totalorder %s30, %s31
      %p45 = scmp.eq.s32.totalorder %s23, 1
      %p46 = por %p44, %p45
      %p48 = scmp.ne.s32.totalorder %s31, %s47
      %p49 = scmp.eq.s32.totalorder %s23, 0
      %p50 = por %p48, %p49
      %s51 = ssub.s32 %s17, %s24
      %p52 = scmp.eq.s32.totalorder %s51, 0
      %s54 = sadd.s32 %s53, 1
      %s55 = scalar_select %p52, %s53, %s54
      %p58 = pneg %p52
      %p59 = scmp.eq.s32.totalorder %s17, 1
      %p60 = por %p58, %p59
      %p61 = scmp.ne.s32.totalorder %s53, %s56
      %p62 = scmp.eq.s32.totalorder %s17, 0
      %p63 = por %p61, %p62
      %p64 = scmp.ne.s32.totalorder %s53, %s56
      %p65 = scmp.eq.s32.totalorder %s22, 1
      %p66 = por %p64, %p65
      %p67 = scmp.ne.s32.totalorder %s56, %s57
      %p68 = scmp.eq.s32.totalorder %s22, 0
      %p69 = por %p67, %p68
      %p70 = scmp.ne.s32.totalorder %s56, %s57
      %p71 = scmp.eq.s32.totalorder %s23, 1
      %p72 = por %p70, %p71
      %p74 = scmp.ne.s32.totalorder %s57, %s73
      %p75 = scmp.eq.s32.totalorder %s23, 0
      %p76 = por %p74, %p75
      %s77 = ssub.s32 %s17, %s24
      %p78 = scmp.eq.s32.totalorder %s77, 0
      %s80 = sadd.s32 %s79, 1
      %s81 = scalar_select %p78, %s79, %s80
      %p84 = pneg %p78
      %p85 = scmp.eq.s32.totalorder %s17, 1
      %p86 = por %p84, %p85
      %p87 = scmp.ne.s32.totalorder %s79, %s82
      %p88 = scmp.eq.s32.totalorder %s17, 0
      %p89 = por %p87, %p88
      %p90 = scmp.ne.s32.totalorder %s79, %s82
      %p91 = scmp.eq.s32.totalorder %s22, 1
      %p92 = por %p90, %p91
      %p93 = scmp.ne.s32.totalorder %s82, %s83
      %p94 = scmp.eq.s32.totalorder %s22, 0
      %p95 = por %p93, %p94
      %p96 = scmp.ne.s32.totalorder %s82, %s83
      %p97 = scmp.eq.s32.totalorder %s23, 1
      %p98 = por %p96, %p97
      %p100 = scmp.ne.s32.totalorder %s83, %s99
      %p101 = scmp.eq.s32.totalorder %s23, 0
      %p102 = por %p100, %p101
      %p103 = scmp.le.s32.totalorder 1, %s17
      %p104 = scmp.lt.s32.totalorder %s17, 3
      %p105 = pnand %p103, %p104
      %p106 = pneg %p105
      // Predicated region
      $region9: #{tpu_custom_call.1} parent=5 // pred_check
        _
      $region10: #{tpu_custom_call.1} parent=5 // pred_check_branch
        %108 = sbr.rel (%p105) target = $region12
      $region11: #{tpu_custom_call.1} parent=5 // pred_region
        %s109 = ssub.s32 %s17, 1
      $region12: #{tpu_custom_call.1} parent=5 // pred_fallthru
        _
      %p110 = scmp.lt.s32.totalorder %s17, 2
      // Predicated region
      $region13: #{tpu_custom_call.1} parent=5 // pred_check
        %p111 = pneg %p110
      $region14: #{tpu_custom_call.1} parent=5 // pred_check_branch
        %113 = sbr.rel (%p111) target = $region16
      $region15: #{tpu_custom_call.1} parent=5 // pred_region
        // Predicated region
        $region17: #{tpu_custom_call.1} parent=15 // pred_check
          %p114 = pneg %p37
        $region18: #{tpu_custom_call.1} parent=15 // pred_check_branch
          %116 = sbr.rel (%p114) target = $region20
        $region19: #{tpu_custom_call.1} parent=15 // pred_region
          %s117 = sand.u32 %s27, 1
          %s118 = scalar_lea.sflag [#allocation3], %s117
          %s119 = sand.u32 %s27, 1
          %s120 = smul.addr %s119, 8
          %s121 = scalar_lea.vmem [#allocation2], %s120
          %s123 = ssub.s32 128, 128
          %124 = vsyncadd %s118, %s123
          %s125 = smul.addr %s17, 128
          %s126 = scalar_lea.hbm %s0, %s125
          %s128 = sshll.u32 %s121, 4
          %s129 = int_to_ptr.vmem [resolvable:$true] %s128
          %131 = dma.hbm_to_vmem [thread:$0]  %s126, 128, %s129, %s118
        $region20: #{tpu_custom_call.1} parent=15 // pred_fallthru
          _
        // Predicated region
        $region21: #{tpu_custom_call.1} parent=15 // pred_check
          %p132 = pneg %p63
        $region22: #{tpu_custom_call.1} parent=15 // pred_check_branch
          %134 = sbr.rel (%p132) target = $region24
        $region23: #{tpu_custom_call.1} parent=15 // pred_region
          %s135 = sand.u32 %s53, 1
          %s136 = scalar_lea.sflag [#allocation6], %s135
          %s137 = sand.u32 %s53, 1
          %s138 = smul.addr %s137, 8
          %s139 = scalar_lea.vmem [#allocation5], %s138
          %s141 = ssub.s32 128, 128
          %142 = vsyncadd %s136, %s141
          %s143 = smul.addr %s17, 128
          %s144 = scalar_lea.hbm %s1, %s143
          %s146 = sshll.u32 %s139, 4
          %s147 = int_to_ptr.vmem [resolvable:$true] %s146
          %149 = dma.hbm_to_vmem [thread:$0]  %s144, 128, %s147, %s136
        $region24: #{tpu_custom_call.1} parent=15 // pred_fallthru
          _
      $region16: #{tpu_custom_call.1} parent=5 // pred_fallthru
        _
      %p150 = scmp.le.s32.totalorder 1, %s17
      %p151 = scmp.lt.s32.totalorder %s17, 3
      %p152 = pnand %p150, %p151
      %p153 = pneg %p152
      // Predicated region
      $region25: #{tpu_custom_call.1} parent=5 // pred_check
        _
      $region26: #{tpu_custom_call.1} parent=5 // pred_check_branch
        %155 = sbr.rel (%p152) target = $region28
      $region27: #{tpu_custom_call.1} parent=5 // pred_region
        %s156 = ssub.s32 %s17, 1
        %s157 = sand.u32 %s30, 1
        %s158 = scalar_lea.sflag [#allocation3], %s157
        %s159 = sand.u32 %s30, 1
        %s160 = smul.addr %s159, 8
        %s161 = scalar_lea.vmem [#allocation2], %s160
        // Predicated region
        $region29: #{tpu_custom_call.1} parent=27 // pred_check
          %p162 = pneg %p43
        $region30: #{tpu_custom_call.1} parent=27 // pred_check_branch
          %164 = sbr.rel (%p162) target = $region32
        $region31: #{tpu_custom_call.1} parent=27 // pred_region
          %165 = dma.done %s158, 128
        $region32: #{tpu_custom_call.1} parent=27 // pred_fallthru
          _
        %s166 = sand.u32 %s56, 1
        %s167 = scalar_lea.sflag [#allocation6], %s166
        %s168 = sand.u32 %s56, 1
        %s169 = smul.addr %s168, 8
        %s170 = scalar_lea.vmem [#allocation5], %s169
        // Predicated region
        $region33: #{tpu_custom_call.1} parent=27 // pred_check
          %p171 = pneg %p69
        $region34: #{tpu_custom_call.1} parent=27 // pred_check_branch
          %173 = sbr.rel (%p171) target = $region36
        $region35: #{tpu_custom_call.1} parent=27 // pred_region
          %174 = dma.done %s167, 128
        $region36: #{tpu_custom_call.1} parent=27 // pred_fallthru
          _
        %s175 = sand.u32 %s30, 1
        %s176 = scalar_lea.sflag [#allocation3], %s175
        %s177 = sand.u32 %s30, 1
        %s178 = smul.addr %s177, 8
        %s179 = scalar_lea.vmem [#allocation2], %s178
        %p180 = pneg %p43
        %p181 = pneg %p40
        %s182 = sand.u32 %s56, 1
        %s183 = scalar_lea.sflag [#allocation6], %s182
        %s184 = sand.u32 %s56, 1
        %s185 = smul.addr %s184, 8
        %s186 = scalar_lea.vmem [#allocation5], %s185
        %p187 = pneg %p69
        %p188 = pneg %p66
        %p189 = pneg %p95
        %p190 = pneg %p92
        %s191 = sand.u32 %s82, 1
        %s192 = scalar_lea.sflag [#allocation4], %s191
        %s193 = sand.u32 %s82, 1
        %s194 = smul.addr %s193, 16
        %s195 = scalar_lea.vmem [#allocation7], %s194
        %v196 = vld [vmem:[%s161] sm:$0xff]
        %v197 = vld [vmem:[%s170] sm:$0xff]
        %v198 = vmul.f32 %v197, -2.0
        %v199 = vadd.f32 %v196, 1e-10
        %v200 = vlog2.pop %v199
        %v201 = vmul.f32 %v200, 0.6931472
        %v202 = vmul.f32 %v198, %v201
        %v203 = vsub.f32 1.0, %v197
        %v204 = vsub.f32 1.0, %v196
        %v205 = vadd.f32 %v204, 1e-10
        %v206 = vlog2.pop %v205
        %v207 = vmul.f32 %v206, 0.6931472
        %v208 = vmul.f32 %v203, %v207
        %v209 = vsub.f32 %v202, %v208
        %vm210 = vcmp.ne.f32.partialorder %v209, %v209
        %vm211 = vmxor %vm210, 1
        %v212 = vsel %vm211, %v209, 0.0
        %v213 = vsel %vm211, 1, 0
        %v214 = vcvt.s32.f32 %v213
        %v215 = vadd.f32 %v212, 0.0
        %v216 = vadd.f32 %v215, 0.0
        %v217 = vadd.f32 %v214, 0.0
        %v218 = vadd.f32 %v217, 0.0
        %219 = vst [vmem:[%s195] sm:$0xff] %v216
        %s220 = scalar_lea.vmem %s195, 8 [#allocation7]
        %221 = vst [vmem:[%s220] sm:$0xff] %v218
        %s222 = sand.u32 %s82, 1
        %s223 = scalar_lea.sflag [#allocation4], %s222
        %s224 = sand.u32 %s82, 1
        %s225 = smul.addr %s224, 16
        %s226 = scalar_lea.vmem [#allocation7], %s225
        // Predicated region
        $region37: #{tpu_custom_call.1} parent=27 // pred_check
          %p227 = pneg %p92
        $region38: #{tpu_custom_call.1} parent=27 // pred_check_branch
          %229 = sbr.rel (%p227) target = $region40
        $region39: #{tpu_custom_call.1} parent=27 // pred_region
          %s231 = ssub.s32 256, 256
          %232 = vsyncadd %s223, %s231
          %s233 = smul.addr %s22, 2
          %s234 = smul.addr %s233, 128
          %s235 = scalar_lea.hbm %s2, %s234
          %s236 = sshll.u32 %s226, 4
          %s237 = int_to_ptr.vmem [resolvable:$true] %s236
          %242 = dma.vmem_to_hbm [thread:$0]  %s237, 256, %s235, %s223, 128, 128, 8
        $region40: #{tpu_custom_call.1} parent=27 // pred_fallthru
          _
      $region28: #{tpu_custom_call.1} parent=5 // pred_fallthru
        _
      %p243 = scmp.le.s32.totalorder 2, %s17
      // Predicated region
      $region41: #{tpu_custom_call.1} parent=5 // pred_check
        %p244 = pneg %p243
      $region42: #{tpu_custom_call.1} parent=5 // pred_check_branch
        %246 = sbr.rel (%p244) target = $region44
      $region43: #{tpu_custom_call.1} parent=5 // pred_region
        %s247 = ssub.s32 %s17, 2
        // Predicated region
        $region45: #{tpu_custom_call.1} parent=43 // pred_check
          %p248 = pneg %p98
        $region46: #{tpu_custom_call.1} parent=43 // pred_check_branch
          %250 = sbr.rel (%p248) target = $region48
        $region47: #{tpu_custom_call.1} parent=43 // pred_region
          %s251 = sand.u32 %s83, 1
          %s252 = scalar_lea.sflag [#allocation4], %s251
          %s253 = sand.u32 %s83, 1
          %s254 = smul.addr %s253, 16
          %s255 = scalar_lea.vmem [#allocation7], %s254
          %256 = dma.done %s252, 256
        $region48: #{tpu_custom_call.1} parent=43 // pred_fallthru
          _
      $region44: #{tpu_custom_call.1} parent=5 // pred_fallthru
        _
    $region6: #{tpu_custom_call.1} parent=1 // loop_footer
      %s21 = sadd.s32 1, %s17
    $region7: #{tpu_custom_call.1} parent=1 // loop_footer_branch
      %16 = sbr.rel target = $region3
    $region8: #{tpu_custom_call.1} parent=1 // loop_exit
      _
    %257 = vsyncpa [#allocation3], 1
    %s258 = scalar_lea.sflag [#allocation3], 1
    %259 = vsyncpa %s258, 1
    %260 = vsyncpa [#allocation6], 1
    %s261 = scalar_lea.sflag [#allocation6], 1
    %262 = vsyncpa %s261, 1
    %263 = vsyncpa [#allocation4], 1
    %s264 = scalar_lea.sflag [#allocation4], 1
    %265 = vsyncpa %s264, 1

</llo_original>
